<compile_context>
chip_gen: v5e
topology: v5e:2x2
jax: 0.10.0
libtpu: 0.0.40
codegen_flags: <defaults>
</compile_context>

<pallas_src>
import jax
import jax.numpy as jnp
from jax.experimental import pallas as pl
from jax.experimental.pallas import tpu as pltpu


_VMEM_LIMIT = 32 * 1024 * 1024  # safe on v5e/v6e (128 MiB) and v7x (64 MiB)
_MAX_ROW_TILE = 512
_MAX_COL_TILE = 2048


def _pick_tile(n, max_tile, align):
    """Largest divisor of n that is a multiple of `align` and <= max_tile.

    Falls back to the full extent n (always a legal block size)."""
    if n <= max_tile:
        return n
    t = (max_tile // align) * align
    while t >= align:
        if n % t == 0:
            return t
        t -= align
    return n


# ----------------------------------------------------------------------------
# Kernel 1: tiled per-row sum / sum-of-squares reduction (init statistics).
#   Grid = (row_tiles, col_tiles); the column axis is the reduction axis
#   ("arbitrary", innermost) and the (TR, 1) outputs stay resident across it.
# ----------------------------------------------------------------------------
def _rowstats_kernel(x_ref, sum_ref, sq_ref):
    j = pl.program_id(1)

    @pl.when(j == 0)
    def _():
        sum_ref[...] = jnp.zeros_like(sum_ref)
        sq_ref[...] = jnp.zeros_like(sq_ref)

    x = x_ref[...].astype(jnp.float32)
    sum_ref[...] += jnp.sum(x, axis=1, keepdims=True)
    sq_ref[...] += jnp.sum(x * x, axis=1, keepdims=True)


@jax.jit
def _row_stats(x2d):
    rows, cols = x2d.shape
    tr = _pick_tile(rows, _MAX_ROW_TILE, 8)
    tc = _pick_tile(cols, _MAX_COL_TILE, 128)
    grid = (rows // tr, cols // tc)
    return pl.pallas_call(
        _rowstats_kernel,
        out_shape=(
            jax.ShapeDtypeStruct((rows, 1), jnp.float32),
            jax.ShapeDtypeStruct((rows, 1), jnp.float32),
        ),
        grid=grid,
        in_specs=[pl.BlockSpec((tr, tc), lambda i, j: (i, j))],
        out_specs=(
            pl.BlockSpec((tr, 1), lambda i, j: (i, 0)),
            pl.BlockSpec((tr, 1), lambda i, j: (i, 0)),
        ),
        compiler_params=pltpu.CompilerParams(
            dimension_semantics=("parallel", "arbitrary"),
            vmem_limit_bytes=_VMEM_LIMIT),
    )(x2d)


# ----------------------------------------------------------------------------
# Kernel 2: tiled elementwise normalize  y = (x - bias_row) * scale_row
#   scale = exp(logs) is precomputed in the wrapper (C elements only).
# ----------------------------------------------------------------------------
def _apply_kernel(x_ref, bias_ref, scale_ref, y_ref):
    x = x_ref[...].astype(jnp.float32)
    y_ref[...] = ((x - bias_ref[...]) * scale_ref[...]).astype(y_ref.dtype)


@jax.jit
def _apply(x2d, bias_rows, scale_rows):
    rows, cols = x2d.shape
    tr = _pick_tile(rows, _MAX_ROW_TILE, 8)
    tc = _pick_tile(cols, _MAX_COL_TILE, 128)
    grid = (rows // tr, cols // tc)
    return pl.pallas_call(
        _apply_kernel,
        out_shape=jax.ShapeDtypeStruct((rows, cols), x2d.dtype),
        grid=grid,
        in_specs=[
            pl.BlockSpec((tr, tc), lambda i, j: (i, j)),
            pl.BlockSpec((tr, 1), lambda i, j: (i, 0)),
            pl.BlockSpec((tr, 1), lambda i, j: (i, 0)),
        ],
        out_specs=pl.BlockSpec((tr, tc), lambda i, j: (i, j)),
        compiler_params=pltpu.CompilerParams(
            dimension_semantics=("parallel", "parallel"),
            vmem_limit_bytes=_VMEM_LIMIT),
    )(x2d, bias_rows, scale_rows)


def num_pixels(x):
    assert x.ndim == 4
    return x.shape[2] * x.shape[3]


class ActNorm:
    """JAX/Pallas re-implementation of the PyTorch ActNorm forward pass."""

    def __init__(self, num_features, eps=1e-05, flow=True):
        self.num_features = num_features
        self.eps = eps  # NOTE: unused in forward (matches the PyTorch module)
        self.flow = flow
        # deterministic parameter init, same as reset_parameters()
        self.logs = jnp.zeros((num_features,), jnp.float32)
        self.bias = jnp.zeros((num_features,), jnp.float32)
        # TODO(synk): requires_init / bias / logs are mutable Python state;
        # they will not update correctly if forward() is wrapped in jax.jit.
        self.requires_init = True
        # Cached per-row (N*C, 1) params so repeated forwards skip the tile.
        self._row_params = None  # (N, bias_rows, scale_rows)

    # -- data-dependent init ---------------------------------------------
    def _init_data_dependent(self, x2d, N, C, H, W):
        # Tiled per-row reduction, then tiny per-channel combine in plain JAX.
        row_sum, row_sq = _row_stats(x2d)
        m = N * H * W
        ch_sum = row_sum.reshape(N, C).sum(axis=0)
        ch_sq = row_sq.reshape(N, C).sum(axis=0)
        mean = ch_sum / m
        # torch.var default is unbiased (divide by m - 1); m == 1 -> NaN,
        # matching torch behaviour.  max(.,0) guards f32 cancellation.
        var = jnp.maximum(ch_sq - m * mean * mean, 0.0) / (m - 1)
        logs = -jnp.log(jnp.sqrt(var) + 1e-6)
        self.bias = mean.astype(jnp.float32)
        self.logs = logs.astype(jnp.float32)
        self._row_params = None  # invalidate cache

    def _get_row_params(self, N, C):
        if self._row_params is not None and self._row_params[0] == N:
            return self._row_params[1], self._row_params[2]
        # Per-row params (channel index of row r is r % C): only N*C scalars.
        scale = jnp.exp(self.logs)
        bias_rows = jnp.tile(self.bias, N).reshape(N * C, 1)
        scale_rows = jnp.tile(scale, N).reshape(N * C, 1)
        self._row_params = (N, bias_rows, scale_rows)
        return bias_rows, scale_rows

    # -- forward -----------------------------------------------------------
    def forward(self, x, log_det_jac=None, z=None):
        N, C, H, W = x.shape
        assert C == self.num_features
        # Free view of row-major NCHW: row r = n*C + c, columns = H*W pixels.
        x2d = x.reshape(N * C, H * W)

        if self.requires_init:
            self.requires_init = False
            self._init_data_dependent(x2d, N, C, H, W)

        bias_rows, scale_rows = self._get_row_params(N, C)
        y = _apply(x2d, bias_rows, scale_rows).reshape(N, C, H, W)

        if not self.flow:
            return y
        log_det_jac = log_det_jac + jnp.sum(self.logs) * (H * W)
        return y, log_det_jac, z


def _reference_forward(x, logs, bias, requires_init, flow, ldj):
    """Pure-JAX reference mirroring the PyTorch semantics, for sanity check."""
    N, C, H, W = x.shape
    if requires_init:
        x_ = jnp.transpose(x, (1, 0, 2, 3)).reshape(C, -1)
        mean = jnp.mean(x_, axis=1)
        var = jnp.var(x_, axis=1, ddof=1)
        logs = -jnp.log(jnp.sqrt(var) + 1e-6)
        bias = mean
    y = (x - bias.reshape(1, C, 1, 1)) * jnp.exp(logs.reshape(1, C, 1, 1))
    if not flow:
        return y, logs, bias, ldj
    ldj = ldj + jnp.sum(logs) * (H * W)
    return y, logs, bias, ldj


if __name__ == "__main__":
    key = jax.random.PRNGKey(0)
    k1, _ = jax.random.split(key)
    N, C, H, W = 2, 4, 16, 16
    x = jax.random.normal(k1, (N, C, H, W), jnp.float32) * 2.5 + 1.0
    ldj0 = jnp.zeros((), jnp.float32)

    mod = ActNorm(num_features=C, eps=1e-5, flow=True)

    # First call: data-dependent init (reduction kernel) + normalize.
    y1, ldj1, z1 = mod.forward(x, log_det_jac=ldj0, z=None)
    y1 = jax.block_until_ready(y1)
    ldj1 = jax.block_until_ready(ldj1)

    # Second call: uses the stored logs/bias (apply kernel only, cached rows).
    y2, ldj2, _ = mod.forward(x, log_det_jac=ldj0, z=None)
    y2 = jax.block_until_ready(y2)
    ldj2 = jax.block_until_ready(ldj2)

    # Sanity check against a pure-JAX reference.
    ry1, rlogs, rbias, rldj1 = _reference_forward(
        x, jnp.zeros((C,)), jnp.zeros((C,)), True, True, ldj0)
    ry2, _, _, rldj2 = _reference_forward(x, rlogs, rbias, False, True, ldj0)

    assert jnp.allclose(y1, ry1, atol=1e-4, rtol=1e-4)
    assert jnp.allclose(y2, ry2, atol=1e-4, rtol=1e-4)
    assert jnp.allclose(ldj1, rldj1, atol=1e-3, rtol=1e-4)
    assert jnp.allclose(ldj2, rldj2, atol=1e-3, rtol=1e-4)
    assert jnp.allclose(mod.logs, rlogs, atol=1e-4)
    assert jnp.allclose(mod.bias, rbias, atol=1e-4)

    print("KERNEL_OK")
</pallas_src>

<mosaic_0001>
module attributes {stable_mosaic.version = 11 : i64} {
  func.func @_rowstats_kernel(%arg0: i32, %arg1: i32, %arg2: memref<8x256xf32, #tpu.memory_space<vmem>>, %arg3: memref<8x1xf32, #tpu.memory_space<vmem>>, %arg4: memref<8x1xf32, #tpu.memory_space<vmem>>) attributes {dimension_semantics = [#tpu.dimension_semantics<parallel>, #tpu.dimension_semantics<arbitrary>], iteration_bounds = array<i64: 1, 1>, scalar_prefetch = 0 : i64, scratch_operands = 0 : i64, tpu.core_type = #tpu.core_type<tc>, window_params = [{transform_indices = @transform_0, window_bounds = array<i64: 8, 256>}, {transform_indices = @transform_1, window_bounds = array<i64: 8, 1>}, {transform_indices = @transform_2, window_bounds = array<i64: 8, 1>}]} {
    %c0_i32 = arith.constant 0 : i32
    %0 = arith.cmpi eq, %arg1, %c0_i32 : i32
    %1 = arith.extui %0 : i1 to i32
    %c0_i32_0 = arith.constant 0 : i32
    %2 = arith.cmpi ne, %1, %c0_i32_0 : i32
    scf.if %2 {
      %cst_11 = arith.constant 0.000000e+00 : f32
      %15 = vector.broadcast %cst_11 : f32 to vector<8x1xf32>
      %c0_12 = arith.constant 0 : index
      %c0_13 = arith.constant 0 : index
      %16 = vector.load %arg3[%c0_12, %c0_13] : memref<8x1xf32, #tpu.memory_space<vmem>>, vector<8x1xf32>
      tpu.vector_store %arg3[%c0_12, %c0_13], %15 {strides = array<i32>} : memref<8x1xf32, #tpu.memory_space<vmem>>, vector<8x1xf32>,
      %cst_14 = arith.constant 0.000000e+00 : f32
      %17 = vector.broadcast %cst_14 : f32 to vector<8x1xf32>
      %c0_15 = arith.constant 0 : index
      %c0_16 = arith.constant 0 : index
      %18 = vector.load %arg4[%c0_15, %c0_16] : memref<8x1xf32, #tpu.memory_space<vmem>>, vector<8x1xf32>
      tpu.vector_store %arg4[%c0_15, %c0_16], %17 {strides = array<i32>} : memref<8x1xf32, #tpu.memory_space<vmem>>, vector<8x1xf32>,
    } else {
    }
    %c0 = arith.constant 0 : index
    %c0_1 = arith.constant 0 : index
    %3 = vector.load %arg2[%c0, %c0_1] : memref<8x256xf32, #tpu.memory_space<vmem>>, vector<8x256xf32>
    %c0_2 = arith.constant 0 : index
    %c0_3 = arith.constant 0 : index
    %4 = vector.load %arg3[%c0_2, %c0_3] : memref<8x1xf32, #tpu.memory_space<vmem>>, vector<8x1xf32>
    %cst = arith.constant dense<0.000000e+00> : vector<8xf32>
    %5 = vector.multi_reduction <add>, %3, %cst [1] : vector<8x256xf32> to vector<8xf32>
    %6 = vector.shape_cast %5 : vector<8xf32> to vector<8x1xf32>
    %7 = arith.addf %4, %6 : vector<8x1xf32>
    %c0_4 = arith.constant 0 : index
    %c0_5 = arith.constant 0 : index
    %8 = vector.load %arg3[%c0_4, %c0_5] : memref<8x1xf32, #tpu.memory_space<vmem>>, vector<8x1xf32>
    tpu.vector_store %arg3[%c0_4, %c0_5], %7 {strides = array<i32>} : memref<8x1xf32, #tpu.memory_space<vmem>>, vector<8x1xf32>,
    %c0_6 = arith.constant 0 : index
    %c0_7 = arith.constant 0 : index
    %9 = vector.load %arg4[%c0_6, %c0_7] : memref<8x1xf32, #tpu.memory_space<vmem>>, vector<8x1xf32>
    %10 = arith.mulf %3, %3 : vector<8x256xf32>
    %cst_8 = arith.constant dense<0.000000e+00> : vector<8xf32>
    %11 = vector.multi_reduction <add>, %10, %cst_8 [1] : vector<8x256xf32> to vector<8xf32>
    %12 = vector.shape_cast %11 : vector<8xf32> to vector<8x1xf32>
    %13 = arith.addf %9, %12 : vector<8x1xf32>
    %c0_9 = arith.constant 0 : index
    %c0_10 = arith.constant 0 : index
    %14 = vector.load %arg4[%c0_9, %c0_10] : memref<8x1xf32, #tpu.memory_space<vmem>>, vector<8x1xf32>
    tpu.vector_store %arg4[%c0_9, %c0_10], %13 {strides = array<i32>} : memref<8x1xf32, #tpu.memory_space<vmem>>, vector<8x1xf32>,
    return
  }
  func.func @transform_0(%arg0: i32, %arg1: i32) -> (i32, i32) {
    %c0_i32 = arith.constant 0 : i32
    return %arg0, %arg1 : i32, i32
  }
  func.func @transform_1(%arg0: i32, %arg1: i32) -> (i32, i32) {
    %c0_i32 = arith.constant 0 : i32
    %c0_i32_0 = arith.constant 0 : i32
    return %arg0, %c0_i32 : i32, i32
  }
  func.func @transform_2(%arg0: i32, %arg1: i32) -> (i32, i32) {
    %c0_i32 = arith.constant 0 : i32
    %c0_i32_0 = arith.constant 0 : i32
    return %arg0, %c0_i32 : i32, i32
  }
}

</mosaic_0001>

<llo_original>
// kernel: _row_stats.1
$region0: #{_row_stats.1}
  #allocation0 [shape = 'u32[]', space=smem, size = 0x4, offset = 0x4, fixed_abs, tag = 'smem constant byte address 0x4 - core index']
  #allocation1 [shape = 'u32[72,128]{1,0:T(1,128)}', space=vmem, size = 0x9000, scoped, tag = 'internal scratch']
  %s0 = inlined_call_operand.hbm [shape: f32[8,256], index: 0, kind: input, shape index: {}]
  %s1 = inlined_call_operand.vmem [shape: f32[8,1], index: 1, kind: output, shape index: {0}]
  %s2 = inlined_call_operand.vmem [shape: f32[8,1], index: 2, kind: output, shape index: {1}]
  %3 = xla_tuple %s1, %s2
  %s4 = sld [smem:[#allocation0]]
  $region30: #{_row_stats.1} parent=0
    _
  %s6 = ssub.s32 1, %s4
  %s7 = scalar_select 0, %s6, %s4
  $region1: #{_row_stats.1} parent=0
    #allocation2 [shape = 'u8[8192]{0}', space=vmem, size = 0x2000, scoped, tag = 'input window, operand 0, single buffered']
    #allocation3 [shape = 's32[1]{0}', space=sflag, size = 0x4, scoped, tag = 'scoped memory for _row_stats.1']
    %8 = vsyncpa [#allocation3], 0
    // Predicated region
    $region2: #{_row_stats.1} parent=1 // pred_check
      _
    $region3: #{_row_stats.1} parent=1 // pred_check_branch
      %10 = sbr.rel (0) target = $region5
    $region4: #{_row_stats.1} parent=1 // pred_region
      %12 = vsyncadd [#allocation3], 0
      %s14 = sshll.u32 %s0, 4
      %s15 = int_to_ptr.hbm [resolvable:$true] %s14
      %s16 = sshll.u32 [#allocation2], 4
      %s17 = int_to_ptr.vmem [resolvable:$true] %s16
      %19 = dma.hbm_to_vmem [thread:$0]  %s15, 256, %s17, [#allocation3]
    $region5: #{_row_stats.1} parent=1 // pred_fallthru
      _
    // Predicated region
    $region6: #{_row_stats.1} parent=1 // pred_check
      _
    $region7: #{_row_stats.1} parent=1 // pred_check_branch
      %21 = sbr.rel (0) target = $region9
    $region8: #{_row_stats.1} parent=1 // pred_region
      %23 = dma.done [#allocation3], 256
    $region9: #{_row_stats.1} parent=1 // pred_fallthru
      _
    %p24 = scmp.eq.s32.totalorder 0, 0
    // Predicated region
    $region10: #{_row_stats.1} parent=1 // pred_check
      %p25 = pneg %p24
    $region11: #{_row_stats.1} parent=1 // pred_check_branch
      %27 = sbr.rel (%p25) target = $region13
    $region12: #{_row_stats.1} parent=1 // pred_region
      %vm28 = vcmask 7168
      %29 = vst.msk [vmem:[%s1] sm:$0xff] %vm28, 0.0
      %30 = vst.msk [vmem:[%s2] sm:$0xff] %vm28, 0.0
    $region13: #{_row_stats.1} parent=1 // pred_fallthru
      _
    %v31 = vld [vmem:[#allocation2] sm:$0xff]
    %v32 = vld [vmem:[#allocation2 + $0x8] sm:$0xff]
    %v33 = vld [vmem:[%s1] sm:$0xff]
    %v34 = vadd.f32 %v31, %v32
    %35 = vadd.xlane.f32.xlu0 %v34
    %v36 = vpop.xlane.xlu0 %35
    %v37 = vadd.f32 %v33, %v36
    %vm38 = vcmask 7168
    %39 = vst.msk [vmem:[%s1] sm:$0xff] %vm38, %v37
    %v40 = vld [vmem:[%s2] sm:$0xff]
    %v41 = vmul.f32 %v31, %v31
    %v42 = vmul.f32 %v32, %v32
    %v43 = vadd.f32 %v41, %v42
    %44 = vadd.xlane.f32.xlu0 %v43
    %v45 = vpop.xlane.xlu0 %44
    %v46 = vadd.f32 %v40, %v45
    %47 = vst.msk [vmem:[%s2] sm:$0xff] %vm38, %v46
    // Predicated region
    $region14: #{_row_stats.1} parent=1 // pred_check
      _
    $region15: #{_row_stats.1} parent=1 // pred_check_branch
      %49 = sbr.rel (0) target = $region17
    $region16: #{_row_stats.1} parent=1 // pred_region
      _
    $region17: #{_row_stats.1} parent=1 // pred_fallthru
      _
    // Predicated region
    $region18: #{_row_stats.1} parent=1 // pred_check
      _
    $region19: #{_row_stats.1} parent=1 // pred_check_branch
      %51 = sbr.rel (0) target = $region21
    $region20: #{_row_stats.1} parent=1 // pred_region
      _
    $region21: #{_row_stats.1} parent=1 // pred_fallthru
      _
    // Predicated region
    $region22: #{_row_stats.1} parent=1 // pred_check
      _
    $region23: #{_row_stats.1} parent=1 // pred_check_branch
      %53 = sbr.rel (0) target = $region25
    $region24: #{_row_stats.1} parent=1 // pred_region
      _
    $region25: #{_row_stats.1} parent=1 // pred_fallthru
      _
    // Predicated region
    $region26: #{_row_stats.1} parent=1 // pred_check
      _
    $region27: #{_row_stats.1} parent=1 // pred_check_branch
      %55 = sbr.rel (0) target = $region29
    $region28: #{_row_stats.1} parent=1 // pred_region
      _
    $region29: #{_row_stats.1} parent=1 // pred_fallthru
      _
    %56 = vsyncpa [#allocation3], 1

</llo_original>
